<compile_context>
chip_gen: v5e
topology: v5e:2x2
jax: 0.10.0
libtpu: 0.0.40
codegen_flags: <defaults>
</compile_context>

<pallas_src>
import functools

import numpy as np
import jax
import jax.numpy as jnp
from jax import lax
from jax.experimental import pallas as pl
from jax.experimental.pallas import tpu as pltpu

_LANE = 128


def _cdiv(a, b):
    return (a + b - 1) // b


def _dice_kernel(out_ref, tgt_ref, inter_ref, union_ref, inter_acc, union_acc,
                 *, total_pixels, tiles_per_chunk):
    # out_ref:   (1, C, TR, 128)  logits, native dtype
    # tgt_ref:   (1, 1, TR, 128)  int32 labels
    # inter_ref: (1, 1, C, 128)   int32 partial intersection counts (per lane)
    # union_ref: (1, 1, C, 128)   int32 partial union counts (per lane)
    # inter_acc, union_acc: (C, TR, 128) int32 VMEM scratch accumulators
    C = out_ref.shape[1]
    TR = out_ref.shape[2]

    chunk = pl.program_id(1)
    t = pl.program_id(2)

    @pl.when(t == 0)
    def _init():
        inter_acc[...] = jnp.zeros_like(inter_acc)
        union_acc[...] = jnp.zeros_like(union_acc)

    # Validity mask: global pixel index < S handles (a) S padded up to a
    # multiple of 128, (b) partial last tile, (c) clamped duplicate tiles in
    # the tail chunk.
    tile_idx = chunk * tiles_per_chunk + t
    row_iota = lax.broadcasted_iota(jnp.int32, (TR, _LANE), 0)
    lane_iota = lax.broadcasted_iota(jnp.int32, (TR, _LANE), 1)
    gpix = (tile_idx * TR + row_iota) * _LANE + lane_iota
    valid = gpix < total_pixels

    # Running argmax over channels: pure VPU elementwise scan, first-occurrence
    # tie-breaking (matches torch.argmax).  Cast to f32 in-kernel so bf16
    # inputs work on v5e too.
    best_val = out_ref[0, 0].astype(jnp.float32)
    best_idx = jnp.zeros((TR, _LANE), jnp.int32)
    for c in range(1, C):
        lc = out_ref[0, c].astype(jnp.float32)
        better = lc > best_val
        best_val = jnp.where(better, lc, best_val)
        best_idx = jnp.where(better, c, best_idx)

    # Clobber invalid pixels so they match no class (cheap: 2 ops per tile,
    # not per channel).
    best_idx = jnp.where(valid, best_idx, -1)
    tgt = jnp.where(valid, tgt_ref[0, 0], -1)

    # Boolean-count accumulation; no float one-hots, no per-step reductions.
    for c in range(C):
        pred_c = best_idx == c
        tgt_c = tgt == c
        inter_acc[c] += (pred_c & tgt_c).astype(jnp.int32)
        union_acc[c] += pred_c.astype(jnp.int32) + tgt_c.astype(jnp.int32)

    @pl.when(t == tiles_per_chunk - 1)
    def _finalize():
        # One sublane reduce per (batch, chunk); the lane reduce happens in
        # the JAX glue.  Stores are lane-dense (last dim = 128).
        inter_ref[0, 0] = jnp.sum(inter_acc[...], axis=1)
        union_ref[0, 0] = jnp.sum(union_acc[...], axis=1)


def dice(output, target, *, block_rows=None, num_chunks=2):
    """output: (N, C, *spatial) float, target: (N, 1, *spatial) int -> (C,) f32."""
    N, C = output.shape[0], output.shape[1]
    S = int(np.prod(output.shape[2:])) if output.ndim > 2 else 1

    out3 = jnp.asarray(output).reshape(N, C, S)          # native dtype, no upcast
    tgt3 = jnp.asarray(target).reshape(N, 1, S).astype(jnp.int32)

    SB = _cdiv(S, _LANE)
    pad = SB * _LANE - S
    if pad:
        out3 = jnp.pad(out3, ((0, 0), (0, 0), (0, pad)))
        tgt3 = jnp.pad(tgt3, ((0, 0), (0, 0), (0, pad)), constant_values=-1)
    out4 = out3.reshape(N, C, SB, _LANE)
    tgt4 = tgt3.reshape(N, 1, SB, _LANE)

    # Tile rows per grid step: ~1 MiB of logits per step (amortizes the
    # ~0.35us/step overhead) while keeping total VMEM (2x double-buffered
    # inputs + int32 accumulators) well under the 16 MiB v5e scoped default
    # and v7x's smaller VMEM.  Must be a multiple of 8 or span the full dim.
    itemsize = jnp.dtype(out4.dtype).itemsize
    if block_rows is None:
        br = (1 << 20) // max(1, C * _LANE * itemsize)
        br = max(8, min(512, (br // 8) * 8))
    else:
        br = int(block_rows)
        if br < SB:
            br = max(8, (br // 8) * 8)
    TR = min(br, SB)

    NT = _cdiv(SB, TR)                      # total spatial tiles
    NC = max(1, min(int(num_chunks), NT))   # parallel super-chunks over S
    TPC = _cdiv(NT, NC)                     # tiles per chunk (sequential)

    kernel = functools.partial(_dice_kernel, total_pixels=S, tiles_per_chunk=TPC)

    def in_map(n, c, t):
        # Clamp tail-chunk tile indices; those tiles are fully masked in-kernel.
        return (n, 0, jnp.minimum(c * TPC + t, NT - 1), 0)

    inter_part, union_part = pl.pallas_call(
        kernel,
        out_shape=(
            jax.ShapeDtypeStruct((N, NC, C, _LANE), jnp.int32),
            jax.ShapeDtypeStruct((N, NC, C, _LANE), jnp.int32),
        ),
        grid_spec=pltpu.PrefetchScalarGridSpec(
            num_scalar_prefetch=0,
            grid=(N, NC, TPC),
            in_specs=[
                pl.BlockSpec((1, C, TR, _LANE), in_map),
                pl.BlockSpec((1, 1, TR, _LANE), in_map),
            ],
            out_specs=(
                pl.BlockSpec((1, 1, C, _LANE), lambda n, c, t: (n, c, 0, 0)),
                pl.BlockSpec((1, 1, C, _LANE), lambda n, c, t: (n, c, 0, 0)),
            ),
            scratch_shapes=[
                pltpu.VMEM((C, TR, _LANE), jnp.int32),
                pltpu.VMEM((C, TR, _LANE), jnp.int32),
            ],
        ),
        compiler_params=pltpu.CompilerParams(
            dimension_semantics=("parallel", "parallel", "arbitrary"),
        ),
    )(out4, tgt4)

    # Tiny glue: combine chunks + lanes (exact int32 sums), then divide & mean.
    inter = inter_part.sum(axis=(1, 3)).astype(jnp.float32)   # (N, C)
    union = union_part.sum(axis=(1, 3)).astype(jnp.float32)   # (N, C)
    score = (2.0 * inter) / (union + 1e-10)
    return score.mean(axis=0)


def _dice_ref(output, target):
    """Pure-JAX reference for validation."""
    C = output.shape[1]
    pred = jnp.argmax(output, axis=1)
    pred_oh = jax.nn.one_hot(pred, C, axis=1, dtype=jnp.float32)
    tgt_oh = jax.nn.one_hot(target[:, 0], C, axis=1, dtype=jnp.float32)
    reduced = tuple(range(2, output.ndim))
    inter = 2.0 * jnp.sum(pred_oh * tgt_oh, axis=reduced)
    union = jnp.sum(pred_oh, axis=reduced) + jnp.sum(tgt_oh, axis=reduced)
    return (inter / (union + 1e-10)).mean(axis=0)


if __name__ == "__main__":
    key = jax.random.PRNGKey(0)

    cases = [
        # (N, C, spatial, kwargs)
        (2, 4, (16, 16), {}),                                   # main small case
        (2, 3, (5, 7), {}),                                     # S % 128 != 0 -> masking path
        (1, 4, (64, 80), dict(block_rows=16, num_chunks=2)),    # multi-tile + chunk split + tail clamp
    ]
    for idx, (N, C, spatial, kw) in enumerate(cases):
        k1, k2 = jax.random.split(jax.random.fold_in(key, idx))
        output = jax.random.normal(k1, (N, C) + spatial, dtype=jnp.float32)
        target = jax.random.randint(k2, (N, 1) + spatial, 0, C, dtype=jnp.int32)

        score = dice(output, target, **kw)
        jax.block_until_ready(score)

        ref = _dice_ref(output, target)
        np.testing.assert_allclose(np.asarray(score), np.asarray(ref),
                                   rtol=1e-5, atol=1e-5)

    print("KERNEL_OK")
</pallas_src>

<mosaic_0001>
module attributes {stable_mosaic.version = 11 : i64} {
  func.func @_dice_kernel(%arg0: i32, %arg1: i32, %arg2: i32, %arg3: memref<1x4x2x128xf32, #tpu.memory_space<vmem>>, %arg4: memref<1x1x2x128xi32, #tpu.memory_space<vmem>>, %arg5: memref<1x1x4x128xi32, #tpu.memory_space<vmem>>, %arg6: memref<1x1x4x128xi32, #tpu.memory_space<vmem>>, %arg7: memref<4x2x128xi32, #tpu.memory_space<vmem>>, %arg8: memref<4x2x128xi32, #tpu.memory_space<vmem>>) attributes {dimension_semantics = [#tpu.dimension_semantics<parallel>, #tpu.dimension_semantics<parallel>, #tpu.dimension_semantics<arbitrary>], iteration_bounds = array<i64: 2, 1, 1>, scalar_prefetch = 0 : i64, scratch_operands = 2 : i64, tpu.core_type = #tpu.core_type<tc>, window_params = [{transform_indices = @transform_0, window_bounds = array<i64: 1, 4, 2, 128>}, {transform_indices = @transform_1, window_bounds = array<i64: 1, 1, 2, 128>}, {transform_indices = @transform_2, window_bounds = array<i64: 1, 1, 4, 128>}, {transform_indices = @transform_3, window_bounds = array<i64: 1, 1, 4, 128>}]} {
    %c0_i32 = arith.constant 0 : i32
    %0 = arith.cmpi eq, %arg2, %c0_i32 : i32
    %1 = arith.extui %0 : i1 to i32
    %c0_i32_0 = arith.constant 0 : i32
    %2 = arith.cmpi ne, %1, %c0_i32_0 : i32
    scf.if %2 {
      %c0_i32_79 = arith.constant 0 : i32
      %128 = vector.broadcast %c0_i32_79 : i32 to vector<4x2x128xi32>
      %c0_80 = arith.constant 0 : index
      %c0_81 = arith.constant 0 : index
      %c0_82 = arith.constant 0 : index
      %129 = vector.load %arg7[%c0_80, %c0_81, %c0_82] : memref<4x2x128xi32, #tpu.memory_space<vmem>>, vector<4x2x128xi32>
      tpu.vector_store %arg7[%c0_80, %c0_81, %c0_82], %128 {strides = array<i32>} : memref<4x2x128xi32, #tpu.memory_space<vmem>>, vector<4x2x128xi32>,
      %c0_i32_83 = arith.constant 0 : i32
      %130 = vector.broadcast %c0_i32_83 : i32 to vector<4x2x128xi32>
      %c0_84 = arith.constant 0 : index
      %c0_85 = arith.constant 0 : index
      %c0_86 = arith.constant 0 : index
      %131 = vector.load %arg8[%c0_84, %c0_85, %c0_86] : memref<4x2x128xi32, #tpu.memory_space<vmem>>, vector<4x2x128xi32>
      tpu.vector_store %arg8[%c0_84, %c0_85, %c0_86], %130 {strides = array<i32>} : memref<4x2x128xi32, #tpu.memory_space<vmem>>, vector<4x2x128xi32>,
    } else {
    }
    %c1_i32 = arith.constant 1 : i32
    %3 = arith.muli %arg1, %c1_i32 : i32
    %4 = arith.addi %3, %arg2 : i32
    %5 = tpu.iota {dimensions = array<i32: 0>} : vector<2x128xi32>
    %6 = tpu.iota {dimensions = array<i32: 1>} : vector<2x128xi32>
    %c2_i32 = arith.constant 2 : i32
    %7 = arith.muli %4, %c2_i32 : i32
    %8 = vector.broadcast %7 : i32 to vector<2x128xi32>
    %9 = arith.addi %8, %5 : vector<2x128xi32>
    %c128_i32 = arith.constant 128 : i32
    %10 = vector.broadcast %c128_i32 : i32 to vector<2x128xi32>
    %11 = arith.muli %9, %10 : vector<2x128xi32>
    %12 = arith.addi %11, %6 : vector<2x128xi32>
    %c256_i32 = arith.constant 256 : i32
    %13 = vector.broadcast %c256_i32 : i32 to vector<2x128xi32>
    %14 = arith.cmpi slt, %12, %13 : vector<2x128xi32>
    %c0 = arith.constant 0 : index
    %c0_1 = arith.constant 0 : index
    %c0_2 = arith.constant 0 : index
    %c0_3 = arith.constant 0 : index
    %15 = vector.load %arg3[%c0, %c0_1, %c0_2, %c0_3] : memref<1x4x2x128xf32, #tpu.memory_space<vmem>>, vector<1x1x2x128xf32>
    %16 = vector.shape_cast %15 : vector<1x1x2x128xf32> to vector<2x128xf32>
    %c0_i32_4 = arith.constant 0 : i32
    %17 = vector.broadcast %c0_i32_4 : i32 to vector<2x128xi32>
    %c0_5 = arith.constant 0 : index
    %c1 = arith.constant 1 : index
    %c0_6 = arith.constant 0 : index
    %c0_7 = arith.constant 0 : index
    %18 = vector.load %arg3[%c0_5, %c1, %c0_6, %c0_7] : memref<1x4x2x128xf32, #tpu.memory_space<vmem>>, vector<1x1x2x128xf32>
    %19 = vector.shape_cast %18 : vector<1x1x2x128xf32> to vector<2x128xf32>
    %20 = arith.cmpf ogt, %19, %16 : vector<2x128xf32>
    %21 = arith.select %20, %19, %16 : vector<2x128xi1>, vector<2x128xf32>
    %c1_i32_8 = arith.constant 1 : i32
    %22 = vector.broadcast %c1_i32_8 : i32 to vector<2x128xi32>
    %23 = arith.select %20, %22, %17 : vector<2x128xi1>, vector<2x128xi32>
    %c0_9 = arith.constant 0 : index
    %c2 = arith.constant 2 : index
    %c0_10 = arith.constant 0 : index
    %c0_11 = arith.constant 0 : index
    %24 = vector.load %arg3[%c0_9, %c2, %c0_10, %c0_11] : memref<1x4x2x128xf32, #tpu.memory_space<vmem>>, vector<1x1x2x128xf32>
    %25 = vector.shape_cast %24 : vector<1x1x2x128xf32> to vector<2x128xf32>
    %26 = arith.cmpf ogt, %25, %21 : vector<2x128xf32>
    %27 = arith.select %26, %25, %21 : vector<2x128xi1>, vector<2x128xf32>
    %c2_i32_12 = arith.constant 2 : i32
    %28 = vector.broadcast %c2_i32_12 : i32 to vector<2x128xi32>
    %29 = arith.select %26, %28, %23 : vector<2x128xi1>, vector<2x128xi32>
    %c0_13 = arith.constant 0 : index
    %c3 = arith.constant 3 : index
    %c0_14 = arith.constant 0 : index
    %c0_15 = arith.constant 0 : index
    %30 = vector.load %arg3[%c0_13, %c3, %c0_14, %c0_15] : memref<1x4x2x128xf32, #tpu.memory_space<vmem>>, vector<1x1x2x128xf32>
    %31 = vector.shape_cast %30 : vector<1x1x2x128xf32> to vector<2x128xf32>
    %32 = arith.cmpf ogt, %31, %27 : vector<2x128xf32>
    %c3_i32 = arith.constant 3 : i32
    %33 = vector.broadcast %c3_i32 : i32 to vector<2x128xi32>
    %34 = arith.select %32, %33, %29 : vector<2x128xi1>, vector<2x128xi32>
    %c-1_i32 = arith.constant -1 : i32
    %35 = vector.broadcast %c-1_i32 : i32 to vector<2x128xi32>
    %36 = arith.select %14, %34, %35 : vector<2x128xi1>, vector<2x128xi32>
    %c0_16 = arith.constant 0 : index
    %c0_17 = arith.constant 0 : index
    %c0_18 = arith.constant 0 : index
    %c0_19 = arith.constant 0 : index
    %37 = vector.load %arg4[%c0_16, %c0_17, %c0_18, %c0_19] : memref<1x1x2x128xi32, #tpu.memory_space<vmem>>, vector<1x1x2x128xi32>
    %38 = vector.shape_cast %37 : vector<1x1x2x128xi32> to vector<2x128xi32>
    %c-1_i32_20 = arith.constant -1 : i32
    %39 = vector.broadcast %c-1_i32_20 : i32 to vector<2x128xi32>
    %40 = arith.select %14, %38, %39 : vector<2x128xi1>, vector<2x128xi32>
    %c0_i32_21 = arith.constant 0 : i32
    %41 = vector.broadcast %c0_i32_21 : i32 to vector<2x128xi32>
    %42 = arith.cmpi eq, %36, %41 : vector<2x128xi32>
    %c0_i32_22 = arith.constant 0 : i32
    %43 = vector.broadcast %c0_i32_22 : i32 to vector<2x128xi32>
    %44 = arith.cmpi eq, %40, %43 : vector<2x128xi32>
    %c0_23 = arith.constant 0 : index
    %c0_24 = arith.constant 0 : index
    %c0_25 = arith.constant 0 : index
    %45 = vector.load %arg7[%c0_23, %c0_24, %c0_25] : memref<4x2x128xi32, #tpu.memory_space<vmem>>, vector<1x2x128xi32>
    %46 = vector.shape_cast %45 : vector<1x2x128xi32> to vector<2x128xi32>
    %47 = arith.andi %42, %44 : vector<2x128xi1>
    %48 = arith.extui %47 : vector<2x128xi1> to vector<2x128xi32>
    %49 = arith.addi %46, %48 : vector<2x128xi32>
    %c0_26 = arith.constant 0 : index
    %c0_27 = arith.constant 0 : index
    %c0_28 = arith.constant 0 : index
    %50 = vector.load %arg7[%c0_26, %c0_27, %c0_28] : memref<4x2x128xi32, #tpu.memory_space<vmem>>, vector<1x2x128xi32>
    %51 = vector.shape_cast %50 : vector<1x2x128xi32> to vector<2x128xi32>
    %52 = vector.shape_cast %49 : vector<2x128xi32> to vector<1x2x128xi32>
    tpu.vector_store %arg7[%c0_26, %c0_27, %c0_28], %52 {strides = array<i32>} : memref<4x2x128xi32, #tpu.memory_space<vmem>>, vector<1x2x128xi32>,
    %c0_29 = arith.constant 0 : index
    %c0_30 = arith.constant 0 : index
    %c0_31 = arith.constant 0 : index
    %53 = vector.load %arg8[%c0_29, %c0_30, %c0_31] : memref<4x2x128xi32, #tpu.memory_space<vmem>>, vector<1x2x128xi32>
    %54 = vector.shape_cast %53 : vector<1x2x128xi32> to vector<2x128xi32>
    %55 = arith.extui %42 : vector<2x128xi1> to vector<2x128xi32>
    %56 = arith.extui %44 : vector<2x128xi1> to vector<2x128xi32>
    %57 = arith.addi %55, %56 : vector<2x128xi32>
    %58 = arith.addi %54, %57 : vector<2x128xi32>
    %c0_32 = arith.constant 0 : index
    %c0_33 = arith.constant 0 : index
    %c0_34 = arith.constant 0 : index
    %59 = vector.load %arg8[%c0_32, %c0_33, %c0_34] : memref<4x2x128xi32, #tpu.memory_space<vmem>>, vector<1x2x128xi32>
    %60 = vector.shape_cast %59 : vector<1x2x128xi32> to vector<2x128xi32>
    %61 = vector.shape_cast %58 : vector<2x128xi32> to vector<1x2x128xi32>
    tpu.vector_store %arg8[%c0_32, %c0_33, %c0_34], %61 {strides = array<i32>} : memref<4x2x128xi32, #tpu.memory_space<vmem>>, vector<1x2x128xi32>,
    %c1_i32_35 = arith.constant 1 : i32
    %62 = vector.broadcast %c1_i32_35 : i32 to vector<2x128xi32>
    %63 = arith.cmpi eq, %36, %62 : vector<2x128xi32>
    %c1_i32_36 = arith.constant 1 : i32
    %64 = vector.broadcast %c1_i32_36 : i32 to vector<2x128xi32>
    %65 = arith.cmpi eq, %40, %64 : vector<2x128xi32>
    %c1_37 = arith.constant 1 : index
    %c0_38 = arith.constant 0 : index
    %c0_39 = arith.constant 0 : index
    %66 = vector.load %arg7[%c1_37, %c0_38, %c0_39] : memref<4x2x128xi32, #tpu.memory_space<vmem>>, vector<1x2x128xi32>
    %67 = vector.shape_cast %66 : vector<1x2x128xi32> to vector<2x128xi32>
    %68 = arith.andi %63, %65 : vector<2x128xi1>
    %69 = arith.extui %68 : vector<2x128xi1> to vector<2x128xi32>
    %70 = arith.addi %67, %69 : vector<2x128xi32>
    %c1_40 = arith.constant 1 : index
    %c0_41 = arith.constant 0 : index
    %c0_42 = arith.constant 0 : index
    %71 = vector.load %arg7[%c1_40, %c0_41, %c0_42] : memref<4x2x128xi32, #tpu.memory_space<vmem>>, vector<1x2x128xi32>
    %72 = vector.shape_cast %71 : vector<1x2x128xi32> to vector<2x128xi32>
    %73 = vector.shape_cast %70 : vector<2x128xi32> to vector<1x2x128xi32>
    tpu.vector_store %arg7[%c1_40, %c0_41, %c0_42], %73 {strides = array<i32>} : memref<4x2x128xi32, #tpu.memory_space<vmem>>, vector<1x2x128xi32>,
    %c1_43 = arith.constant 1 : index
    %c0_44 = arith.constant 0 : index
    %c0_45 = arith.constant 0 : index
    %74 = vector.load %arg8[%c1_43, %c0_44, %c0_45] : memref<4x2x128xi32, #tpu.memory_space<vmem>>, vector<1x2x128xi32>
    %75 = vector.shape_cast %74 : vector<1x2x128xi32> to vector<2x128xi32>
    %76 = arith.extui %63 : vector<2x128xi1> to vector<2x128xi32>
    %77 = arith.extui %65 : vector<2x128xi1> to vector<2x128xi32>
    %78 = arith.addi %76, %77 : vector<2x128xi32>
    %79 = arith.addi %75, %78 : vector<2x128xi32>
    %c1_46 = arith.constant 1 : index
    %c0_47 = arith.constant 0 : index
    %c0_48 = arith.constant 0 : index
    %80 = vector.load %arg8[%c1_46, %c0_47, %c0_48] : memref<4x2x128xi32, #tpu.memory_space<vmem>>, vector<1x2x128xi32>
    %81 = vector.shape_cast %80 : vector<1x2x128xi32> to vector<2x128xi32>
    %82 = vector.shape_cast %79 : vector<2x128xi32> to vector<1x2x128xi32>
    tpu.vector_store %arg8[%c1_46, %c0_47, %c0_48], %82 {strides = array<i32>} : memref<4x2x128xi32, #tpu.memory_space<vmem>>, vector<1x2x128xi32>,
    %c2_i32_49 = arith.constant 2 : i32
    %83 = vector.broadcast %c2_i32_49 : i32 to vector<2x128xi32>
    %84 = arith.cmpi eq, %36, %83 : vector<2x128xi32>
    %c2_i32_50 = arith.constant 2 : i32
    %85 = vector.broadcast %c2_i32_50 : i32 to vector<2x128xi32>
    %86 = arith.cmpi eq, %40, %85 : vector<2x128xi32>
    %c2_51 = arith.constant 2 : index
    %c0_52 = arith.constant 0 : index
    %c0_53 = arith.constant 0 : index
    %87 = vector.load %arg7[%c2_51, %c0_52, %c0_53] : memref<4x2x128xi32, #tpu.memory_space<vmem>>, vector<1x2x128xi32>
    %88 = vector.shape_cast %87 : vector<1x2x128xi32> to vector<2x128xi32>
    %89 = arith.andi %84, %86 : vector<2x128xi1>
    %90 = arith.extui %89 : vector<2x128xi1> to vector<2x128xi32>
    %91 = arith.addi %88, %90 : vector<2x128xi32>
    %c2_54 = arith.constant 2 : index
    %c0_55 = arith.constant 0 : index
    %c0_56 = arith.constant 0 : index
    %92 = vector.load %arg7[%c2_54, %c0_55, %c0_56] : memref<4x2x128xi32, #tpu.memory_space<vmem>>, vector<1x2x128xi32>
    %93 = vector.shape_cast %92 : vector<1x2x128xi32> to vector<2x128xi32>
    %94 = vector.shape_cast %91 : vector<2x128xi32> to vector<1x2x128xi32>
    tpu.vector_store %arg7[%c2_54, %c0_55, %c0_56], %94 {strides = array<i32>} : memref<4x2x128xi32, #tpu.memory_space<vmem>>, vector<1x2x128xi32>,
    %c2_57 = arith.constant 2 : index
    %c0_58 = arith.constant 0 : index
    %c0_59 = arith.constant 0 : index
    %95 = vector.load %arg8[%c2_57, %c0_58, %c0_59] : memref<4x2x128xi32, #tpu.memory_space<vmem>>, vector<1x2x128xi32>
    %96 = vector.shape_cast %95 : vector<1x2x128xi32> to vector<2x128xi32>
    %97 = arith.extui %84 : vector<2x128xi1> to vector<2x128xi32>
    %98 = arith.extui %86 : vector<2x128xi1> to vector<2x128xi32>
    %99 = arith.addi %97, %98 : vector<2x128xi32>
    %100 = arith.addi %96, %99 : vector<2x128xi32>
    %c2_60 = arith.constant 2 : index
    %c0_61 = arith.constant 0 : index
    %c0_62 = arith.constant 0 : index
    %101 = vector.load %arg8[%c2_60, %c0_61, %c0_62] : memref<4x2x128xi32, #tpu.memory_space<vmem>>, vector<1x2x128xi32>
    %102 = vector.shape_cast %101 : vector<1x2x128xi32> to vector<2x128xi32>
    %103 = vector.shape_cast %100 : vector<2x128xi32> to vector<1x2x128xi32>
    tpu.vector_store %arg8[%c2_60, %c0_61, %c0_62], %103 {strides = array<i32>} : memref<4x2x128xi32, #tpu.memory_space<vmem>>, vector<1x2x128xi32>,
    %c3_i32_63 = arith.constant 3 : i32
    %104 = vector.broadcast %c3_i32_63 : i32 to vector<2x128xi32>
    %105 = arith.cmpi eq, %36, %104 : vector<2x128xi32>
    %c3_i32_64 = arith.constant 3 : i32
    %106 = vector.broadcast %c3_i32_64 : i32 to vector<2x128xi32>
    %107 = arith.cmpi eq, %40, %106 : vector<2x128xi32>
    %c3_65 = arith.constant 3 : index
    %c0_66 = arith.constant 0 : index
    %c0_67 = arith.constant 0 : index
    %108 = vector.load %arg7[%c3_65, %c0_66, %c0_67] : memref<4x2x128xi32, #tpu.memory_space<vmem>>, vector<1x2x128xi32>
    %109 = vector.shape_cast %108 : vector<1x2x128xi32> to vector<2x128xi32>
    %110 = arith.andi %105, %107 : vector<2x128xi1>
    %111 = arith.extui %110 : vector<2x128xi1> to vector<2x128xi32>
    %112 = arith.addi %109, %111 : vector<2x128xi32>
    %c3_68 = arith.constant 3 : index
    %c0_69 = arith.constant 0 : index
    %c0_70 = arith.constant 0 : index
    %113 = vector.load %arg7[%c3_68, %c0_69, %c0_70] : memref<4x2x128xi32, #tpu.memory_space<vmem>>, vector<1x2x128xi32>
    %114 = vector.shape_cast %113 : vector<1x2x128xi32> to vector<2x128xi32>
    %115 = vector.shape_cast %112 : vector<2x128xi32> to vector<1x2x128xi32>
    tpu.vector_store %arg7[%c3_68, %c0_69, %c0_70], %115 {strides = array<i32>} : memref<4x2x128xi32, #tpu.memory_space<vmem>>, vector<1x2x128xi32>,
    %c3_71 = arith.constant 3 : index
    %c0_72 = arith.constant 0 : index
    %c0_73 = arith.constant 0 : index
    %116 = vector.load %arg8[%c3_71, %c0_72, %c0_73] : memref<4x2x128xi32, #tpu.memory_space<vmem>>, vector<1x2x128xi32>
    %117 = vector.shape_cast %116 : vector<1x2x128xi32> to vector<2x128xi32>
    %118 = arith.extui %105 : vector<2x128xi1> to vector<2x128xi32>
    %119 = arith.extui %107 : vector<2x128xi1> to vector<2x128xi32>
    %120 = arith.addi %118, %119 : vector<2x128xi32>
    %121 = arith.addi %117, %120 : vector<2x128xi32>
    %c3_74 = arith.constant 3 : index
    %c0_75 = arith.constant 0 : index
    %c0_76 = arith.constant 0 : index
    %122 = vector.load %arg8[%c3_74, %c0_75, %c0_76] : memref<4x2x128xi32, #tpu.memory_space<vmem>>, vector<1x2x128xi32>
    %123 = vector.shape_cast %122 : vector<1x2x128xi32> to vector<2x128xi32>
    %124 = vector.shape_cast %121 : vector<2x128xi32> to vector<1x2x128xi32>
    tpu.vector_store %arg8[%c3_74, %c0_75, %c0_76], %124 {strides = array<i32>} : memref<4x2x128xi32, #tpu.memory_space<vmem>>, vector<1x2x128xi32>,
    %c0_i32_77 = arith.constant 0 : i32
    %125 = arith.cmpi eq, %arg2, %c0_i32_77 : i32
    %126 = arith.extui %125 : i1 to i32
    %c0_i32_78 = arith.constant 0 : i32
    %127 = arith.cmpi ne, %126, %c0_i32_78 : i32
    scf.if %127 {
      %c0_79 = arith.constant 0 : index
      %c0_80 = arith.constant 0 : index
      %c0_81 = arith.constant 0 : index
      %128 = vector.load %arg7[%c0_79, %c0_80, %c0_81] : memref<4x2x128xi32, #tpu.memory_space<vmem>>, vector<4x2x128xi32>
      %cst = arith.constant dense<0> : vector<4x128xi32>
      %129 = vector.multi_reduction <add>, %128, %cst [1] : vector<4x2x128xi32> to vector<4x128xi32>
      %c0_82 = arith.constant 0 : index
      %c0_83 = arith.constant 0 : index
      %c0_84 = arith.constant 0 : index
      %c0_85 = arith.constant 0 : index
      %130 = vector.load %arg5[%c0_82, %c0_83, %c0_84, %c0_85] : memref<1x1x4x128xi32, #tpu.memory_space<vmem>>, vector<1x1x4x128xi32>
      %131 = vector.shape_cast %130 : vector<1x1x4x128xi32> to vector<4x128xi32>
      %132 = vector.shape_cast %129 : vector<4x128xi32> to vector<1x1x4x128xi32>
      tpu.vector_store %arg5[%c0_82, %c0_83, %c0_84, %c0_85], %132 {strides = array<i32>} : memref<1x1x4x128xi32, #tpu.memory_space<vmem>>, vector<1x1x4x128xi32>,
      %c0_86 = arith.constant 0 : index
      %c0_87 = arith.constant 0 : index
      %c0_88 = arith.constant 0 : index
      %133 = vector.load %arg8[%c0_86, %c0_87, %c0_88] : memref<4x2x128xi32, #tpu.memory_space<vmem>>, vector<4x2x128xi32>
      %cst_89 = arith.constant dense<0> : vector<4x128xi32>
      %134 = vector.multi_reduction <add>, %133, %cst_89 [1] : vector<4x2x128xi32> to vector<4x128xi32>
      %c0_90 = arith.constant 0 : index
      %c0_91 = arith.constant 0 : index
      %c0_92 = arith.constant 0 : index
      %c0_93 = arith.constant 0 : index
      %135 = vector.load %arg6[%c0_90, %c0_91, %c0_92, %c0_93] : memref<1x1x4x128xi32, #tpu.memory_space<vmem>>, vector<1x1x4x128xi32>
      %136 = vector.shape_cast %135 : vector<1x1x4x128xi32> to vector<4x128xi32>
      %137 = vector.shape_cast %134 : vector<4x128xi32> to vector<1x1x4x128xi32>
      tpu.vector_store %arg6[%c0_90, %c0_91, %c0_92, %c0_93], %137 {strides = array<i32>} : memref<1x1x4x128xi32, #tpu.memory_space<vmem>>, vector<1x1x4x128xi32>,
    } else {
    }
    return
  }
  func.func @transform_0(%arg0: i32, %arg1: i32, %arg2: i32) -> (i32, i32, i32, i32) {
    %c1_i32 = arith.constant 1 : i32
    %0 = arith.muli %arg1, %c1_i32 : i32
    %1 = arith.addi %0, %arg2 : i32
    %c0_i32 = arith.constant 0 : i32
    %2 = arith.minsi %1, %c0_i32 : i32
    %c0_i32_0 = arith.constant 0 : i32
    %c0_i32_1 = arith.constant 0 : i32
    %c0_i32_2 = arith.constant 0 : i32
    return %arg0, %c0_i32_0, %2, %c0_i32_1 : i32, i32, i32, i32
  }
  func.func @transform_1(%arg0: i32, %arg1: i32, %arg2: i32) -> (i32, i32, i32, i32) {
    %c1_i32 = arith.constant 1 : i32
    %0 = arith.muli %arg1, %c1_i32 : i32
    %1 = arith.addi %0, %arg2 : i32
    %c0_i32 = arith.constant 0 : i32
    %2 = arith.minsi %1, %c0_i32 : i32
    %c0_i32_0 = arith.constant 0 : i32
    %c0_i32_1 = arith.constant 0 : i32
    %c0_i32_2 = arith.constant 0 : i32
    return %arg0, %c0_i32_0, %2, %c0_i32_1 : i32, i32, i32, i32
  }
  func.func @transform_2(%arg0: i32, %arg1: i32, %arg2: i32) -> (i32, i32, i32, i32) {
    %c0_i32 = arith.constant 0 : i32
    %c0_i32_0 = arith.constant 0 : i32
    %c0_i32_1 = arith.constant 0 : i32
    return %arg0, %arg1, %c0_i32, %c0_i32_0 : i32, i32, i32, i32
  }
  func.func @transform_3(%arg0: i32, %arg1: i32, %arg2: i32) -> (i32, i32, i32, i32) {
    %c0_i32 = arith.constant 0 : i32
    %c0_i32_0 = arith.constant 0 : i32
    %c0_i32_1 = arith.constant 0 : i32
    return %arg0, %arg1, %c0_i32, %c0_i32_0 : i32, i32, i32, i32
  }
}

</mosaic_0001>

<llo_original>
// kernel: tpu_custom_call.1
$region0: #{tpu_custom_call.1}
  #allocation0 [shape = 'u32[]', space=smem, size = 0x4, offset = 0x4, fixed_abs, tag = 'smem constant byte address 0x4 - core index']
  #allocation1 [shape = 'u32[72,128]{1,0:T(1,128)}', space=vmem, size = 0x9000, scoped, tag = 'internal scratch']
  #allocation2 [shape = 's32[4,2,128]{2,1,0:T(2,128)}', space=vmem, size = 0x1000, scoped, tag = 'scratch operand']
  #allocation3 [shape = 's32[4,2,128]{2,1,0:T(2,128)}', space=vmem, size = 0x1000, scoped, tag = 'scratch operand']
  %s0 = inlined_call_operand.hbm [shape: f32[2,4,2,128], index: 0, kind: input, shape index: {}]
  %s1 = inlined_call_operand.hbm [shape: s32[2,1,2,128], index: 1, kind: input, shape index: {}]
  %s2 = inlined_call_operand.hbm [shape: s32[2,1,4,128], index: 2, kind: output, shape index: {0}]
  %s3 = inlined_call_operand.hbm [shape: s32[2,1,4,128], index: 3, kind: output, shape index: {1}]
  %4 = xla_tuple %s2, %s3
  %s5 = sld [smem:[#allocation0]]
  $region65: #{tpu_custom_call.1} parent=0
    _
  %s7 = ssub.s32 1, %s5
  %s8 = scalar_select 0, %s7, %s5
  $region1: #{tpu_custom_call.1} parent=0
    #allocation4 [shape = 'u8[8192]{0}', space=vmem, size = 0x2000, scoped, tag = 'input window, operand 0']
    #allocation5 [shape = 's32[2]{0}', space=sflag, size = 0x8, scoped, tag = 'scoped memory for tpu_custom_call.1']
    #allocation6 [shape = 's32[2]{0}', space=sflag, size = 0x8, scoped, tag = 'scoped memory for tpu_custom_call.1']
    #allocation7 [shape = 'u8[2048]{0}', space=vmem, size = 0x800, scoped, tag = 'input window, operand 1']
    #allocation8 [shape = 's32[2]{0}', space=sflag, size = 0x8, scoped, tag = 'scoped memory for tpu_custom_call.1']
    #allocation9 [shape = 'u8[4096]{0}', space=vmem, size = 0x1000, scoped, tag = 'output window, operand 0']
    #allocation10 [shape = 'u8[4096]{0}', space=vmem, size = 0x1000, scoped, tag = 'output window, operand 1']
    #allocation11 [shape = 's32[2]{0}', space=sflag, size = 0x8, scoped, tag = 'scoped memory for tpu_custom_call.1']
    %9 = vsyncpa [#allocation5], 0
    %s10 = scalar_lea.sflag [#allocation5], 1
    %11 = vsyncpa %s10, 0
    %12 = vsyncpa [#allocation8], 0
    %s13 = scalar_lea.sflag [#allocation8], 1
    %14 = vsyncpa %s13, 0
    %15 = vsyncpa [#allocation6], 0
    %s16 = scalar_lea.sflag [#allocation6], 1
    %17 = vsyncpa %s16, 0
    %18 = vsyncpa [#allocation11], 0
    %s19 = scalar_lea.sflag [#allocation11], 1
    %20 = vsyncpa %s19, 0
    loop: start=0, step=1, limit=4
    $region2: #{tpu_custom_call.1} parent=1 // loop_pre_header
      _
    $region3: #{tpu_custom_call.1} parent=1 // loop_header
      %s22 = sphi 0, %s26
      %p23 = scmp.ge.s32.totalorder %s22, 4
      %s29 = sphi 0, %s48
      %s30 = sphi 0, %s44
      %s31 = sphi 0, %s40
      %s32 = sphi 0, %s29
      %s33 = sphi 0, %s30
      %s34 = sphi 0, %s31
      %s35 = sphi 0, %s32
      %s36 = sphi 0, %s33
      %s37 = sphi 0, %s34
      %s59 = sphi 0, %s61
      %s62 = sphi 0, %s59
      %s63 = sphi 0, %s62
      %s79 = sphi 0, %s63
      %s93 = sphi 0, %s95
      %s96 = sphi 0, %s93
      %s97 = sphi 0, %s96
      %s113 = sphi 0, %s97
      %s121 = sphi 0, %s123
      %s124 = sphi 0, %s121
      %s125 = sphi 0, %s124
      %s141 = sphi 0, %s125
      %s149 = sphi 0, %s151
      %s152 = sphi 0, %s149
      %s153 = sphi 0, %s152
      %s169 = sphi 0, %s153
    $region4: #{tpu_custom_call.1} parent=1 // loop_header_branch
      %25 = sbr.rel (%p23) target = $region8
    $region5: #{tpu_custom_call.1} parent=1 // loop_body
      %s27 = ssub.s32 %s22, 1
      %s28 = ssub.s32 %s22, 2
      %s38 = sadd.s32 1, %s31
      %p39 = scmp.ge.s32.totalorder %s38, 1
      %s40 = scalar_select %p39, 0, %s38
      %s41 = sadd.s32 1, %s30
      %s42 = scalar_select %p39, %s41, %s30
      %p43 = scmp.ge.s32.totalorder %s42, 1
      %s44 = scalar_select %p43, 0, %s42
      %s45 = sadd.s32 1, %s29
      %s46 = scalar_select %p43, %s45, %s29
      %p47 = scmp.ge.s32.totalorder %s46, 2
      %s48 = scalar_select %p47, 0, %s46
      %s49 = sadd.s32 %s30, %s31
      %p50 = scmp.lt.s32.totalorder %s49, 0
      %s51 = scalar_select %p50, %s49, 0
      %s52 = sadd.s32 %s44, %s40
      %p53 = scmp.lt.s32.totalorder %s52, 0
      %s54 = scalar_select %p53, %s52, 0
      %s55 = ssub.s32 %s29, %s48
      %s56 = ssub.s32 %s51, %s54
      %s57 = sor.u32 %s55, %s56
      %p58 = scmp.eq.s32.totalorder %s57, 0
      %s60 = sadd.s32 %s59, 1
      %s61 = scalar_select %p58, %s59, %s60
      %p64 = pneg %p58
      %p65 = scmp.eq.s32.totalorder %s22, 1
      %p66 = por %p64, %p65
      %p67 = scmp.ne.s32.totalorder %s59, %s62
      %p68 = scmp.eq.s32.totalorder %s22, 0
      %p69 = por %p67, %p68
      %p70 = scmp.ne.s32.totalorder %s59, %s62
      %p71 = scmp.eq.s32.totalorder %s27, 1
      %p72 = por %p70, %p71
      %p73 = scmp.ne.s32.totalorder %s62, %s63
      %p74 = scmp.eq.s32.totalorder %s27, 0
      %p75 = por %p73, %p74
      %p76 = scmp.ne.s32.totalorder %s62, %s63
      %p77 = scmp.eq.s32.totalorder %s28, 1
      %p78 = por %p76, %p77
      %p80 = scmp.ne.s32.totalorder %s63, %s79
      %p81 = scmp.eq.s32.totalorder %s28, 0
      %p82 = por %p80, %p81
      %s83 = sadd.s32 %s30, %s31
      %p84 = scmp.lt.s32.totalorder %s83, 0
      %s85 = scalar_select %p84, %s83, 0
      %s86 = sadd.s32 %s44, %s40
      %p87 = scmp.lt.s32.totalorder %s86, 0
      %s88 = scalar_select %p87, %s86, 0
      %s89 = ssub.s32 %s29, %s48
      %s90 = ssub.s32 %s85, %s88
      %s91 = sor.u32 %s89, %s90
      %p92 = scmp.eq.s32.totalorder %s91, 0
      %s94 = sadd.s32 %s93, 1
      %s95 = scalar_select %p92, %s93, %s94
      %p98 = pneg %p92
      %p99 = scmp.eq.s32.totalorder %s22, 1
      %p100 = por %p98, %p99
      %p101 = scmp.ne.s32.totalorder %s93, %s96
      %p102 = scmp.eq.s32.totalorder %s22, 0
      %p103 = por %p101, %p102
      %p104 = scmp.ne.s32.totalorder %s93, %s96
      %p105 = scmp.eq.s32.totalorder %s27, 1
      %p106 = por %p104, %p105
      %p107 = scmp.ne.s32.totalorder %s96, %s97
      %p108 = scmp.eq.s32.totalorder %s27, 0
      %p109 = por %p107, %p108
      %p110 = scmp.ne.s32.totalorder %s96, %s97
      %p111 = scmp.eq.s32.totalorder %s28, 1
      %p112 = por %p110, %p111
      %p114 = scmp.ne.s32.totalorder %s97, %s113
      %p115 = scmp.eq.s32.totalorder %s28, 0
      %p116 = por %p114, %p115
      %s117 = ssub.s32 %s29, %s48
      %s118 = ssub.s32 %s30, %s44
      %s119 = sor.u32 %s117, %s118
      %p120 = scmp.eq.s32.totalorder %s119, 0
      %s122 = sadd.s32 %s121, 1
      %s123 = scalar_select %p120, %s121, %s122
      %p126 = pneg %p120
      %p127 = scmp.eq.s32.totalorder %s22, 1
      %p128 = por %p126, %p127
      %p129 = scmp.ne.s32.totalorder %s121, %s124
      %p130 = scmp.eq.s32.totalorder %s22, 0
      %p131 = por %p129, %p130
      %p132 = scmp.ne.s32.totalorder %s121, %s124
      %p133 = scmp.eq.s32.totalorder %s27, 1
      %p134 = por %p132, %p133
      %p135 = scmp.ne.s32.totalorder %s124, %s125
      %p136 = scmp.eq.s32.totalorder %s27, 0
      %p137 = por %p135, %p136
      %p138 = scmp.ne.s32.totalorder %s124, %s125
      %p139 = scmp.eq.s32.totalorder %s28, 1
      %p140 = por %p138, %p139
      %p142 = scmp.ne.s32.totalorder %s125, %s141
      %p143 = scmp.eq.s32.totalorder %s28, 0
      %p144 = por %p142, %p143
      %s145 = ssub.s32 %s29, %s48
      %s146 = ssub.s32 %s30, %s44
      %s147 = sor.u32 %s145, %s146
      %p148 = scmp.eq.s32.totalorder %s147, 0
      %s150 = sadd.s32 %s149, 1
      %s151 = scalar_select %p148, %s149, %s150
      %p154 = pneg %p148
      %p155 = scmp.eq.s32.totalorder %s22, 1
      %p156 = por %p154, %p155
      %p157 = scmp.ne.s32.totalorder %s149, %s152
      %p158 = scmp.eq.s32.totalorder %s22, 0
      %p159 = por %p157, %p158
      %p160 = scmp.ne.s32.totalorder %s149, %s152
      %p161 = scmp.eq.s32.totalorder %s27, 1
      %p162 = por %p160, %p161
      %p163 = scmp.ne.s32.totalorder %s152, %s153
      %p164 = scmp.eq.s32.totalorder %s27, 0
      %p165 = por %p163, %p164
      %p166 = scmp.ne.s32.totalorder %s152, %s153
      %p167 = scmp.eq.s32.totalorder %s28, 1
      %p168 = por %p166, %p167
      %p170 = scmp.ne.s32.totalorder %s153, %s169
      %p171 = scmp.eq.s32.totalorder %s28, 0
      %p172 = por %p170, %p171
      %p173 = scmp.le.s32.totalorder 1, %s22
      %p174 = scmp.lt.s32.totalorder %s22, 3
      %p175 = pnand %p173, %p174
      %p176 = pneg %p175
      // Predicated region
      $region9: #{tpu_custom_call.1} parent=5 // pred_check
        _
      $region10: #{tpu_custom_call.1} parent=5 // pred_check_branch
        %178 = sbr.rel (%p175) target = $region12
      $region11: #{tpu_custom_call.1} parent=5 // pred_region
        %s179 = ssub.s32 %s22, 1
      $region12: #{tpu_custom_call.1} parent=5 // pred_fallthru
        _
      %p180 = scmp.lt.s32.totalorder %s22, 2
      // Predicated region
      $region13: #{tpu_custom_call.1} parent=5 // pred_check
        %p181 = pneg %p180
      $region14: #{tpu_custom_call.1} parent=5 // pred_check_branch
        %183 = sbr.rel (%p181) target = $region16
      $region15: #{tpu_custom_call.1} parent=5 // pred_region
        // Predicated region
        $region17: #{tpu_custom_call.1} parent=15 // pred_check
          %p184 = pneg %p69
        $region18: #{tpu_custom_call.1} parent=15 // pred_check_branch
          %186 = sbr.rel (%p184) target = $region20
        $region19: #{tpu_custom_call.1} parent=15 // pred_region
          %s187 = sand.u32 %s59, 1
          %s188 = scalar_lea.sflag [#allocation5], %s187
          %s189 = sand.u32 %s59, 1
          %s190 = smul.addr %s189, 8
          %s191 = scalar_lea.vmem [#allocation4], %s190
          %s192 = sadd.s32 %s30, %s31
          %p193 = scmp.lt.s32.totalorder %s192, 0
          %s194 = scalar_select %p193, %s192, 0
          %196 = vsyncadd %s188, 0
          %s197 = smul.addr %s29, 4
          %s198 = sadd.s32 %s194, %s197
          %s199 = smul.addr %s198, 2
          %s200 = scalar_lea.hbm %s0, %s199
          %s201 = sshll.u32 %s200, 4
          %s202 = int_to_ptr.hbm [resolvable:$true] %s201
          %s203 = sshll.u32 %s191, 4
          %s204 = int_to_ptr.vmem [resolvable:$true] %s203
          %209 = dma.hbm_to_vmem [thread:$0]  %s202, 128, %s204, %s188, 32, 32, 2
        $region20: #{tpu_custom_call.1} parent=15 // pred_fallthru
          _
        // Predicated region
        $region21: #{tpu_custom_call.1} parent=15 // pred_check
          %p210 = pneg %p103
        $region22: #{tpu_custom_call.1} parent=15 // pred_check_branch
          %212 = sbr.rel (%p210) target = $region24
        $region23: #{tpu_custom_call.1} parent=15 // pred_region
          %s213 = sand.u32 %s93, 1
          %s214 = scalar_lea.sflag [#allocation8], %s213
          %s215 = sand.u32 %s93, 1
          %s216 = smul.addr %s215, 2
          %s217 = scalar_lea.vmem [#allocation7], %s216
          %s218 = sadd.s32 %s30, %s31
          %p219 = scmp.lt.s32.totalorder %s218, 0
          %s220 = scalar_select %p219, %s218, 0
          %222 = vsyncadd %s214, 0
          %s223 = sadd.s32 %s220, %s29
          %s224 = smul.addr %s223, 2
          %s225 = scalar_lea.hbm %s1, %s224
          %s227 = sshll.u32 %s225, 4
          %s228 = int_to_ptr.hbm [resolvable:$true] %s227
          %s229 = sshll.u32 %s217, 4
          %s230 = int_to_ptr.vmem [resolvable:$true] %s229
          %232 = dma.hbm_to_vmem [thread:$0]  %s228, 32, %s230, %s214
        $region24: #{tpu_custom_call.1} parent=15 // pred_fallthru
          _
      $region16: #{tpu_custom_call.1} parent=5 // pred_fallthru
        _
      %p233 = scmp.le.s32.totalorder 1, %s22
      %p234 = scmp.lt.s32.totalorder %s22, 3
      %p235 = pnand %p233, %p234
      %p236 = pneg %p235
      // Predicated region
      $region25: #{tpu_custom_call.1} parent=5 // pred_check
        _
      $region26: #{tpu_custom_call.1} parent=5 // pred_check_branch
        %238 = sbr.rel (%p235) target = $region28
      $region27: #{tpu_custom_call.1} parent=5 // pred_region
        %s239 = ssub.s32 %s22, 1
        %s240 = sand.u32 %s62, 1
        %s241 = scalar_lea.sflag [#allocation5], %s240
        %s242 = sand.u32 %s62, 1
        %s243 = smul.addr %s242, 8
        %s244 = scalar_lea.vmem [#allocation4], %s243
        // Predicated region
        $region29: #{tpu_custom_call.1} parent=27 // pred_check
          %p245 = pneg %p75
        $region30: #{tpu_custom_call.1} parent=27 // pred_check_branch
          %247 = sbr.rel (%p245) target = $region32
        $region31: #{tpu_custom_call.1} parent=27 // pred_region
          %249 = dma.done %s241, 128
        $region32: #{tpu_custom_call.1} parent=27 // pred_fallthru
          _
        %s250 = sand.u32 %s96, 1
        %s251 = scalar_lea.sflag [#allocation8], %s250
        %s252 = sand.u32 %s96, 1
        %s253 = smul.addr %s252, 2
        %s254 = scalar_lea.vmem [#allocation7], %s253
        // Predicated region
        $region33: #{tpu_custom_call.1} parent=27 // pred_check
          %p255 = pneg %p109
        $region34: #{tpu_custom_call.1} parent=27 // pred_check_branch
          %257 = sbr.rel (%p255) target = $region36
        $region35: #{tpu_custom_call.1} parent=27 // pred_region
          %259 = dma.done %s251, 32
        $region36: #{tpu_custom_call.1} parent=27 // pred_fallthru
          _
        %s260 = sand.u32 %s62, 1
        %s261 = scalar_lea.sflag [#allocation5], %s260
        %s262 = sand.u32 %s62, 1
        %s263 = smul.addr %s262, 8
        %s264 = scalar_lea.vmem [#allocation4], %s263
        %p265 = pneg %p75
        %p266 = pneg %p72
        %s267 = sand.u32 %s96, 1
        %s268 = scalar_lea.sflag [#allocation8], %s267
        %s269 = sand.u32 %s96, 1
        %s270 = smul.addr %s269, 2
        %s271 = scalar_lea.vmem [#allocation7], %s270
        %p272 = pneg %p109
        %p273 = pneg %p106
        %p274 = pneg %p137
        %p275 = pneg %p134
        %s276 = sand.u32 %s124, 1
        %s277 = scalar_lea.sflag [#allocation6], %s276
        %s278 = sand.u32 %s124, 1
        %s279 = smul.addr %s278, 4
        %s280 = scalar_lea.vmem [#allocation9], %s279
        %p281 = pneg %p165
        %p282 = pneg %p162
        %s283 = sand.u32 %s152, 1
        %s284 = scalar_lea.sflag [#allocation11], %s283
        %s285 = sand.u32 %s152, 1
        %s286 = smul.addr %s285, 4
        %s287 = scalar_lea.vmem [#allocation10], %s286
        %s288 = sadd.s32 %s33, %s34
        %p289 = scmp.lt.s32.totalorder %s288, 0
        %s290 = scalar_select %p289, %s288, 0
        %s291 = sadd.s32 %s33, %s34
        %p292 = scmp.lt.s32.totalorder %s291, 0
        %s293 = scalar_select %p292, %s291, 0
        %p294 = scmp.eq.s32.totalorder %s34, 0
        // Predicated region
        $region37: #{tpu_custom_call.1} parent=27 // pred_check
          %p295 = pneg %p294
        $region38: #{tpu_custom_call.1} parent=27 // pred_check_branch
          %297 = sbr.rel (%p295) target = $region40
        $region39: #{tpu_custom_call.1} parent=27 // pred_region
          %298 = vst [vmem:[#allocation2] sm:$0x3] 0
          %299 = vst [vmem:[#allocation2 + $0x2] sm:$0x3] 0
          %300 = vst [vmem:[#allocation2 + $0x4] sm:$0x3] 0
          %301 = vst [vmem:[#allocation2 + $0x6] sm:$0x3] 0
          %302 = vst [vmem:[#allocation3] sm:$0x3] 0
          %303 = vst [vmem:[#allocation3 + $0x2] sm:$0x3] 0
          %304 = vst [vmem:[#allocation3 + $0x4] sm:$0x3] 0
          %305 = vst [vmem:[#allocation3 + $0x6] sm:$0x3] 0
        $region40: #{tpu_custom_call.1} parent=27 // pred_fallthru
          _
        %s306 = sadd.s32 %s33, %s34
        %v307 = vlaneseq
        %v308 = vshrl.u32 %v307, 7
        %v309 = vlaneseq
        %v310 = vand.u32 %v309, 127
        %s311 = smul.u32 %s306, 2
        %v312 = vstv %s311
        %v313 = vadd.s32 %v312, %v308
        %v314 = vmul.u32 %v313, 128
        %v315 = vadd.s32 %v314, %v310
        %vm316 = vcmp.lt.s32.totalorder %v315, 256
        %v317 = vld [vmem:[%s244] sm:$0x3]
        %s318 = scalar_lea.vmem %s244, 2 [#allocation4]
        %v319 = vld [vmem:[%s318] sm:$0x3]
        %vm320 = vcmp.gt.f32.partialorder %v319, %v317
        %v321 = vsel %vm320, %v319, %v317
        %v322 = vsel %vm320, 1, 0
        %s323 = scalar_lea.vmem %s244, 4 [#allocation4]
        %v324 = vld [vmem:[%s323] sm:$0x3]
        %vm325 = vcmp.gt.f32.partialorder %v324, %v321
        %v326 = vsel %vm325, %v324, %v321
        %v327 = vsel %vm325, 2, %v322
        %s328 = scalar_lea.vmem %s244, 6 [#allocation4]
        %v329 = vld [vmem:[%s328] sm:$0x3]
        %vm330 = vcmp.gt.f32.partialorder %v329, %v326
        %v331 = vsel %vm330, 3, %v327
        %v332 = vsel %vm316, %v331, 4294967295
        %v333 = vld [vmem:[%s254] sm:$0x3]
        %v334 = vsel %vm316, %v333, 4294967295
        %vm335 = vcmp.eq.s32.totalorder %v332, 0
        %vm336 = vcmp.eq.s32.totalorder %v334, 0
        %v337 = vld [vmem:[#allocation2] sm:$0x3]
        %vm338 = vmand %vm335, %vm336
        %v339 = vsel %vm338, 1, 0
        %v340 = vadd.s32 %v337, %v339
        %341 = vst [vmem:[#allocation2] sm:$0x3] %v340
        %v342 = vld [vmem:[#allocation3] sm:$0x3]
        %v343 = vsel %vm335, 1, 0
        %v344 = vsel %vm336, 1, 0
        %v345 = vadd.s32 %v343, %v344
        %v346 = vadd.s32 %v342, %v345
        %347 = vst [vmem:[#allocation3] sm:$0x3] %v346
        %vm348 = vcmp.eq.s32.totalorder %v332, 1
        %vm349 = vcmp.eq.s32.totalorder %v334, 1
        %s350 = scalar_lea.vmem [#allocation2], 2
        %v351 = vld [vmem:[%s350] sm:$0x3]
        %vm352 = vmand %vm348, %vm349
        %v353 = vsel %vm352, 1, 0
        %v354 = vadd.s32 %v351, %v353
        %355 = vst [vmem:[%s350] sm:$0x3] %v354
        %s356 = scalar_lea.vmem [#allocation3], 2
        %v357 = vld [vmem:[%s356] sm:$0x3]
        %v358 = vsel %vm348, 1, 0
        %v359 = vsel %vm349, 1, 0
        %v360 = vadd.s32 %v358, %v359
        %v361 = vadd.s32 %v357, %v360
        %362 = vst [vmem:[%s356] sm:$0x3] %v361
        %vm363 = vcmp.eq.s32.totalorder %v332, 2
        %vm364 = vcmp.eq.s32.totalorder %v334, 2
        %s365 = scalar_lea.vmem [#allocation2], 4
        %v366 = vld [vmem:[%s365] sm:$0x3]
        %vm367 = vmand %vm363, %vm364
        %v368 = vsel %vm367, 1, 0
        %v369 = vadd.s32 %v366, %v368
        %370 = vst [vmem:[%s365] sm:$0x3] %v369
        %s371 = scalar_lea.vmem [#allocation3], 4
        %v372 = vld [vmem:[%s371] sm:$0x3]
        %v373 = vsel %vm363, 1, 0
        %v374 = vsel %vm364, 1, 0
        %v375 = vadd.s32 %v373, %v374
        %v376 = vadd.s32 %v372, %v375
        %377 = vst [vmem:[%s371] sm:$0x3] %v376
        %vm378 = vcmp.eq.s32.totalorder %v332, 3
        %vm379 = vcmp.eq.s32.totalorder %v334, 3
        %s380 = scalar_lea.vmem [#allocation2], 6
        %v381 = vld [vmem:[%s380] sm:$0x3]
        %vm382 = vmand %vm378, %vm379
        %v383 = vsel %vm382, 1, 0
        %v384 = vadd.s32 %v381, %v383
        %385 = vst [vmem:[%s380] sm:$0x3] %v384
        %s386 = scalar_lea.vmem [#allocation3], 6
        %v387 = vld [vmem:[%s386] sm:$0x3]
        %v388 = vsel %vm378, 1, 0
        %v389 = vsel %vm379, 1, 0
        %v390 = vadd.s32 %v388, %v389
        %v391 = vadd.s32 %v387, %v390
        %392 = vst [vmem:[%s386] sm:$0x3] %v391
        // Predicated region
        $region41: #{tpu_custom_call.1} parent=27 // pred_check
          %p393 = pneg %p294
        $region42: #{tpu_custom_call.1} parent=27 // pred_check_branch
          %395 = sbr.rel (%p393) target = $region44
        $region43: #{tpu_custom_call.1} parent=27 // pred_region
          %v396 = vld [vmem:[#allocation2] sm:$0x3]
          %v397 = vld [vmem:[#allocation2 + $0x2] sm:$0x3]
          %v398 = vld [vmem:[#allocation2 + $0x4] sm:$0x3]
          %v399 = vld [vmem:[#allocation2 + $0x6] sm:$0x3]
          %vm400 = vcmask 1041408
          %v401 = vsel %vm400, %v396, 0
          %v402 = vrot.slane %v401, 4
          %v403 = vadd.s32 %v401, %v402
          %v404 = vrot.slane %v403, 2
          %v405 = vadd.s32 %v403, %v404
          %v406 = vrot.slane %v405, 1
          %v407 = vadd.s32 %v405, %v406
          %v408 = vsel %vm400, %v397, 0
          %v409 = vrot.slane %v408, 4
          %v410 = vadd.s32 %v408, %v409
          %v411 = vrot.slane %v410, 2
          %v412 = vadd.s32 %v410, %v411
          %v413 = vrot.slane %v412, 1
          %v414 = vadd.s32 %v412, %v413
          %v415 = vsel %vm400, %v398, 0
          %v416 = vrot.slane %v415, 4
          %v417 = vadd.s32 %v415, %v416
          %v418 = vrot.slane %v417, 2
          %v419 = vadd.s32 %v417, %v418
          %v420 = vrot.slane %v419, 1
          %v421 = vadd.s32 %v419, %v420
          %v422 = vsel %vm400, %v399, 0
          %v423 = vrot.slane %v422, 4
          %v424 = vadd.s32 %v422, %v423
          %v425 = vrot.slane %v424, 2
          %v426 = vadd.s32 %v424, %v425
          %v427 = vrot.slane %v426, 1
          %v428 = vadd.s32 %v426, %v427
          %vm429 = vcmask 1041409
          %v430 = vsel %vm429, %v414, %v407
          %vm431 = vcmask 1042434
          %v432 = vsel %vm431, %v421, %v430
          %vm433 = vcmask 1043459
          %v434 = vsel %vm433, %v428, %v432
          %435 = vst [vmem:[%s280] sm:$0xf] %v434
          %v436 = vld [vmem:[#allocation3] sm:$0x3]
          %v437 = vld [vmem:[#allocation3 + $0x2] sm:$0x3]
          %v438 = vld [vmem:[#allocation3 + $0x4] sm:$0x3]
          %v439 = vld [vmem:[#allocation3 + $0x6] sm:$0x3]
          %v440 = vsel %vm400, %v436, 0
          %v441 = vrot.slane %v440, 4
          %v442 = vadd.s32 %v440, %v441
          %v443 = vrot.slane %v442, 2
          %v444 = vadd.s32 %v442, %v443
          %v445 = vrot.slane %v444, 1
          %v446 = vadd.s32 %v444, %v445
          %v447 = vsel %vm400, %v437, 0
          %v448 = vrot.slane %v447, 4
          %v449 = vadd.s32 %v447, %v448
          %v450 = vrot.slane %v449, 2
          %v451 = vadd.s32 %v449, %v450
          %v452 = vrot.slane %v451, 1
          %v453 = vadd.s32 %v451, %v452
          %v454 = vsel %vm400, %v438, 0
          %v455 = vrot.slane %v454, 4
          %v456 = vadd.s32 %v454, %v455
          %v457 = vrot.slane %v456, 2
          %v458 = vadd.s32 %v456, %v457
          %v459 = vrot.slane %v458, 1
          %v460 = vadd.s32 %v458, %v459
          %v461 = vsel %vm400, %v439, 0
          %v462 = vrot.slane %v461, 4
          %v463 = vadd.s32 %v461, %v462
          %v464 = vrot.slane %v463, 2
          %v465 = vadd.s32 %v463, %v464
          %v466 = vrot.slane %v465, 1
          %v467 = vadd.s32 %v465, %v466
          %v468 = vsel %vm429, %v453, %v446
          %v469 = vsel %vm431, %v460, %v468
          %v470 = vsel %vm433, %v467, %v469
          %471 = vst [vmem:[%s287] sm:$0xf] %v470
        $region44: #{tpu_custom_call.1} parent=27 // pred_fallthru
          _
        %s472 = sand.u32 %s124, 1
        %s473 = scalar_lea.sflag [#allocation6], %s472
        %s474 = sand.u32 %s124, 1
        %s475 = smul.addr %s474, 4
        %s476 = scalar_lea.vmem [#allocation9], %s475
        %s477 = sand.u32 %s152, 1
        %s478 = scalar_lea.sflag [#allocation11], %s477
        %s479 = sand.u32 %s152, 1
        %s480 = smul.addr %s479, 4
        %s481 = scalar_lea.vmem [#allocation10], %s480
        // Predicated region
        $region45: #{tpu_custom_call.1} parent=27 // pred_check
          %p482 = pneg %p134
        $region46: #{tpu_custom_call.1} parent=27 // pred_check_branch
          %484 = sbr.rel (%p482) target = $region48
        $region47: #{tpu_custom_call.1} parent=27 // pred_region
          %486 = vsyncadd %s473, 0
          %s487 = sadd.s32 %s33, %s32
          %s488 = smul.addr %s487, 4
          %s489 = scalar_lea.hbm %s2, %s488
          %s491 = sshll.u32 %s476, 4
          %s492 = int_to_ptr.vmem [resolvable:$true] %s491
          %s493 = sshll.u32 %s489, 4
          %s494 = int_to_ptr.hbm [resolvable:$true] %s493
          %496 = dma.vmem_to_hbm [thread:$0]  %s492, 64, %s494, %s473
        $region48: #{tpu_custom_call.1} parent=27 // pred_fallthru
          _
        // Predicated region
        $region49: #{tpu_custom_call.1} parent=27 // pred_check
          %p497 = pneg %p162
        $region50: #{tpu_custom_call.1} parent=27 // pred_check_branch
          %499 = sbr.rel (%p497) target = $region52
        $region51: #{tpu_custom_call.1} parent=27 // pred_region
          %501 = vsyncadd %s478, 0
          %s502 = sadd.s32 %s33, %s32
          %s503 = smul.addr %s502, 4
          %s504 = scalar_lea.hbm %s3, %s503
          %s506 = sshll.u32 %s481, 4
          %s507 = int_to_ptr.vmem [resolvable:$true] %s506
          %s508 = sshll.u32 %s504, 4
          %s509 = int_to_ptr.hbm [resolvable:$true] %s508
          %511 = dma.vmem_to_hbm [thread:$0]  %s507, 64, %s509, %s478
        $region52: #{tpu_custom_call.1} parent=27 // pred_fallthru
          _
      $region28: #{tpu_custom_call.1} parent=5 // pred_fallthru
        _
      %p512 = scmp.le.s32.totalorder 2, %s22
      // Predicated region
      $region53: #{tpu_custom_call.1} parent=5 // pred_check
        %p513 = pneg %p512
      $region54: #{tpu_custom_call.1} parent=5 // pred_check_branch
        %515 = sbr.rel (%p513) target = $region56
      $region55: #{tpu_custom_call.1} parent=5 // pred_region
        %s516 = ssub.s32 %s22, 2
        // Predicated region
        $region57: #{tpu_custom_call.1} parent=55 // pred_check
          %p517 = pneg %p140
        $region58: #{tpu_custom_call.1} parent=55 // pred_check_branch
          %519 = sbr.rel (%p517) target = $region60
        $region59: #{tpu_custom_call.1} parent=55 // pred_region
          %s520 = sand.u32 %s125, 1
          %s521 = scalar_lea.sflag [#allocation6], %s520
          %s522 = sand.u32 %s125, 1
          %s523 = smul.addr %s522, 4
          %s524 = scalar_lea.vmem [#allocation9], %s523
          %526 = dma.done %s521, 64
        $region60: #{tpu_custom_call.1} parent=55 // pred_fallthru
          _
        // Predicated region
        $region61: #{tpu_custom_call.1} parent=55 // pred_check
          %p527 = pneg %p168
        $region62: #{tpu_custom_call.1} parent=55 // pred_check_branch
          %529 = sbr.rel (%p527) target = $region64
        $region63: #{tpu_custom_call.1} parent=55 // pred_region
          %s530 = sand.u32 %s153, 1
          %s531 = scalar_lea.sflag [#allocation11], %s530
          %s532 = sand.u32 %s153, 1
          %s533 = smul.addr %s532, 4
          %s534 = scalar_lea.vmem [#allocation10], %s533
          %536 = dma.done %s531, 64
        $region64: #{tpu_custom_call.1} parent=55 // pred_fallthru
          _
      $region56: #{tpu_custom_call.1} parent=5 // pred_fallthru
        _
    $region6: #{tpu_custom_call.1} parent=1 // loop_footer
      %s26 = sadd.s32 1, %s22
    $region7: #{tpu_custom_call.1} parent=1 // loop_footer_branch
      %21 = sbr.rel target = $region3
    $region8: #{tpu_custom_call.1} parent=1 // loop_exit
      _
    %537 = vsyncpa [#allocation5], 1
    %s538 = scalar_lea.sflag [#allocation5], 1
    %539 = vsyncpa %s538, 1
    %540 = vsyncpa [#allocation8], 1
    %s541 = scalar_lea.sflag [#allocation8], 1
    %542 = vsyncpa %s541, 1
    %543 = vsyncpa [#allocation6], 1
    %s544 = scalar_lea.sflag [#allocation6], 1
    %545 = vsyncpa %s544, 1
    %546 = vsyncpa [#allocation11], 1
    %s547 = scalar_lea.sflag [#allocation11], 1
    %548 = vsyncpa %s547, 1

</llo_original>
